<compile_context>
chip_gen: v7x
topology: tpu7x:2x2x1
jax: 0.10.0
libtpu: 0.0.40
codegen_flags: <defaults>
</compile_context>

<pallas_src>
import functools

import jax
import jax.numpy as jnp
from jax.experimental import pallas as pl
from jax.experimental.pallas import tpu as pltpu


_NEG_BIG = -1e30  # finite stand-in for -inf on padded class columns (avoids 0 * -inf NaNs)


def _round_up(n: int, m: int) -> int:
    return ((n + m - 1) // m) * m


def _mlp_ce_kernel(nvalid_ref,                     # SMEM scalar-prefetch: (1,) int32, true batch size
                   x_ref, w1_ref, b1_ref, w2_ref, b2_ref, labels_ref,
                   logits_ref, loss_ref):
    tb = x_ref.shape[0]
    n_cls = logits_ref.shape[1]

    # ---- fc1 + ReLU (bf16 operands, f32 accumulation) ----
    x = x_ref[...]                                                    # (TB, D1) bf16
    h = jnp.dot(x, w1_ref[...], preferred_element_type=jnp.float32)   # (TB, D1) f32
    h = jnp.maximum(h + b1_ref[...], 0.0)

    # ---- fc2 -> logits (padded class columns get bias -1e30) ----
    logits = jnp.dot(h.astype(jnp.bfloat16), w2_ref[...],
                     preferred_element_type=jnp.float32) + b2_ref[...]  # (TB, C) f32
    logits_ref[...] = logits.astype(logits_ref.dtype)

    # ---- CrossEntropy epilogue (all f32, lane-dense) ----
    m = jnp.max(logits, axis=-1, keepdims=True)                        # (TB, 1)
    shifted = logits - m
    lse = jnp.log(jnp.sum(jnp.exp(shifted), axis=-1, keepdims=True))   # (TB, 1)

    col = jax.lax.broadcasted_iota(jnp.int32, (tb, n_cls), 1)
    onehot = col == labels_ref[...]                                    # (TB, C) bool
    target_shifted = jnp.sum(jnp.where(onehot, shifted, 0.0),
                             axis=-1, keepdims=True)                   # (TB, 1)
    nll = lse - target_shifted                                         # (TB, 1)

    # mask padded batch rows out of the partial sum
    row = pl.program_id(0) * tb + jax.lax.broadcasted_iota(jnp.int32, (tb, 1), 0)
    valid = (row < nvalid_ref[0]).astype(jnp.float32)
    partial = jnp.sum(nll * valid)

    # lane-dense (1, 128) partial-loss tile for this grid step
    loss_ref[...] = jnp.full(loss_ref.shape, partial, dtype=jnp.float32)


@jax.jit
def mlp_forward(x, w1, b1, w2, b2, labels):
    B, d_in = x.shape
    d_out = w2.shape[1]

    # Tile / padding choices: 128-aligned lanes everywhere; batch tile TB is
    # 128 for large batches, else the smallest 8-multiple that covers B.
    TB = 128 if B >= 128 else _round_up(B, 8)
    D1 = _round_up(d_in, 128)
    D2 = _round_up(d_out, 128)
    Bp = _round_up(B, TB)
    grid_b = Bp // TB

    # ---- pad & cast inputs (zeros are inert; padded classes get -1e30 bias) ----
    x_p = jnp.zeros((Bp, D1), jnp.bfloat16).at[:B, :d_in].set(x.astype(jnp.bfloat16))
    w1_p = jnp.zeros((D1, D1), jnp.bfloat16).at[:d_in, :d_in].set(w1.astype(jnp.bfloat16))
    b1_p = jnp.zeros((1, D1), jnp.float32).at[:, :d_in].set(b1.astype(jnp.float32))
    w2_p = jnp.zeros((D1, D2), jnp.bfloat16).at[:d_in, :d_out].set(w2.astype(jnp.bfloat16))
    b2_p = jnp.full((1, D2), _NEG_BIG, jnp.float32).at[:, :d_out].set(b2.astype(jnp.float32))
    labels_p = jnp.zeros((Bp, 1), jnp.int32).at[:B, :].set(labels.astype(jnp.int32))
    n_valid = jnp.array([B], dtype=jnp.int32)

    logits_p, partials = pl.pallas_call(
        _mlp_ce_kernel,
        out_shape=(
            jax.ShapeDtypeStruct((Bp, D2), jnp.float32),       # padded logits
            jax.ShapeDtypeStruct((grid_b, 128), jnp.float32),  # per-tile NLL partial sums
        ),
        grid_spec=pltpu.PrefetchScalarGridSpec(
            num_scalar_prefetch=1,
            grid=(grid_b,),
            in_specs=[
                pl.BlockSpec((TB, D1), lambda i, nv: (i, 0)),   # x (batch-tiled)
                pl.BlockSpec((D1, D1), lambda i, nv: (0, 0)),   # w1 (grid-invariant)
                pl.BlockSpec((1, D1), lambda i, nv: (0, 0)),    # b1
                pl.BlockSpec((D1, D2), lambda i, nv: (0, 0)),   # w2 (grid-invariant)
                pl.BlockSpec((1, D2), lambda i, nv: (0, 0)),    # b2
                pl.BlockSpec((TB, 1), lambda i, nv: (i, 0)),    # labels (batch-tiled)
            ],
            out_specs=(
                pl.BlockSpec((TB, D2), lambda i, nv: (i, 0)),   # logits (batch-tiled)
                pl.BlockSpec((1, 128), lambda i, nv: (i, 0)),   # partial loss per tile
            ),
        ),
        compiler_params=pltpu.CompilerParams(
            dimension_semantics=("parallel",),   # batch axis shards across TCs on v7x
        ),
    )(n_valid, x_p, w1_p, b1_p, w2_p, b2_p, labels_p)

    loss = jnp.sum(partials[:, 0]) / jnp.float32(B)
    return {"loss": loss, "logits": logits_p[:B, :d_out]}


def init_params(key, d_in, d_out):
    """Deterministic nn.Linear-style init (uniform in +/- 1/sqrt(fan_in))."""
    k1, k2, k3, k4 = jax.random.split(key, 4)
    bound1 = 1.0 / jnp.sqrt(d_in)
    w1 = jax.random.uniform(k1, (d_in, d_in), jnp.float32, -bound1, bound1)
    b1 = jax.random.uniform(k2, (1, d_in), jnp.float32, -bound1, bound1)
    bound2 = 1.0 / jnp.sqrt(d_in)
    w2 = jax.random.uniform(k3, (d_in, d_out), jnp.float32, -bound2, bound2)
    b2 = jax.random.uniform(k4, (1, d_out), jnp.float32, -bound2, bound2)
    return w1, b1, w2, b2


if __name__ == "__main__":
    B, D_IN, D_OUT = 8, 32, 8

    key = jax.random.PRNGKey(0)
    k_x, k_lbl, k_params = jax.random.split(key, 3)

    x = jax.random.normal(k_x, (B, D_IN), dtype=jnp.float32)
    labels = jax.random.randint(k_lbl, (B, 1), 0, D_OUT, dtype=jnp.int32)
    w1, b1, w2, b2 = init_params(k_params, D_IN, D_OUT)

    out = mlp_forward(x, w1, b1, w2, b2, labels)
    jax.block_until_ready(out)

    # ---- sanity check vs. pure-JAX reference using the same bf16 MXU operands ----
    xb, w1b, w2b = (t.astype(jnp.bfloat16) for t in (x, w1, w2))
    h_ref = jnp.maximum(
        jnp.dot(xb, w1b, preferred_element_type=jnp.float32) + b1, 0.0)
    logits_ref = jnp.dot(h_ref.astype(jnp.bfloat16), w2b,
                         preferred_element_type=jnp.float32) + b2
    lse = jax.scipy.special.logsumexp(logits_ref, axis=-1)
    nll = lse - jnp.take_along_axis(logits_ref, labels, axis=-1)[:, 0]
    loss_ref = jnp.mean(nll)

    assert jnp.allclose(out["logits"], logits_ref, atol=5e-3, rtol=5e-3), "logits mismatch"
    assert jnp.allclose(out["loss"], loss_ref, atol=5e-3, rtol=5e-3), "loss mismatch"

    # coarse check against a full-f32 reference (bf16 operand rounding only)
    h32 = jnp.maximum(x @ w1 + b1, 0.0)
    logits32 = h32 @ w2 + b2
    assert jnp.allclose(out["logits"], logits32, atol=5e-2, rtol=5e-2), "f32 ref mismatch"

    print("KERNEL_OK")
</pallas_src>

<mosaic_0001>
module attributes {stable_mosaic.version = 11 : i64} {
  func.func @_mlp_ce_kernel(%arg0: i32, %arg1: memref<1xi32, #tpu.memory_space<smem>>, %arg2: memref<8x128xbf16, #tpu.memory_space<vmem>>, %arg3: memref<128x128xbf16, #tpu.memory_space<vmem>>, %arg4: memref<1x128xf32, #tpu.memory_space<vmem>>, %arg5: memref<128x128xbf16, #tpu.memory_space<vmem>>, %arg6: memref<1x128xf32, #tpu.memory_space<vmem>>, %arg7: memref<8x1xi32, #tpu.memory_space<vmem>>, %arg8: memref<8x128xf32, #tpu.memory_space<vmem>>, %arg9: memref<1x128xf32, #tpu.memory_space<vmem>>) attributes {dimension_semantics = [#tpu.dimension_semantics<parallel>], iteration_bounds = array<i64: 1>, scalar_prefetch = 1 : i64, scratch_operands = 0 : i64, tpu.core_type = #tpu.core_type<tc>, window_params = [{transform_indices = @transform_0, window_bounds = array<i64: 8, 128>}, {pipeline_mode = #tpu.pipeline_mode<synchronous>, transform_indices = @transform_1, window_bounds = array<i64: 128, 128>}, {pipeline_mode = #tpu.pipeline_mode<synchronous>, transform_indices = @transform_2, window_bounds = array<i64: 1, 128>}, {pipeline_mode = #tpu.pipeline_mode<synchronous>, transform_indices = @transform_3, window_bounds = array<i64: 128, 128>}, {pipeline_mode = #tpu.pipeline_mode<synchronous>, transform_indices = @transform_4, window_bounds = array<i64: 1, 128>}, {transform_indices = @transform_5, window_bounds = array<i64: 8, 1>}, {transform_indices = @transform_6, window_bounds = array<i64: 8, 128>}, {transform_indices = @transform_7, window_bounds = array<i64: 1, 128>}]} {
    %c0 = arith.constant 0 : index
    %c0_0 = arith.constant 0 : index
    %0 = vector.load %arg2[%c0, %c0_0] : memref<8x128xbf16, #tpu.memory_space<vmem>>, vector<8x128xbf16>
    %c0_1 = arith.constant 0 : index
    %c0_2 = arith.constant 0 : index
    %1 = vector.load %arg3[%c0_1, %c0_2] : memref<128x128xbf16, #tpu.memory_space<vmem>>, vector<128x128xbf16>
    %cst = arith.constant dense<0.000000e+00> : vector<8x128xf32>
    %2 = tpu.matmul %0, %1, %cst {dimension_numbers = #tpu.dot_dimension_numbers<[1], [0], [0], [1], [0, 0, 1, 1], [], []>} : vector<8x128xbf16>, vector<128x128xbf16>, vector<8x128xf32> -> vector<8x128xf32>
    %c0_3 = arith.constant 0 : index
    %c0_4 = arith.constant 0 : index
    %3 = vector.load %arg4[%c0_3, %c0_4] : memref<1x128xf32, #tpu.memory_space<vmem>>, vector<1x128xf32>
    %4 = vector.broadcast %3 : vector<1x128xf32> to vector<8x128xf32>
    %5 = arith.addf %2, %4 : vector<8x128xf32>
    %cst_5 = arith.constant 0.000000e+00 : f32
    %6 = vector.broadcast %cst_5 : f32 to vector<8x128xf32>
    %7 = arith.maximumf %5, %6 : vector<8x128xf32>
    %8 = arith.truncf %7 : vector<8x128xf32> to vector<8x128xbf16>
    %c0_6 = arith.constant 0 : index
    %c0_7 = arith.constant 0 : index
    %9 = vector.load %arg5[%c0_6, %c0_7] : memref<128x128xbf16, #tpu.memory_space<vmem>>, vector<128x128xbf16>
    %cst_8 = arith.constant dense<0.000000e+00> : vector<8x128xf32>
    %10 = tpu.matmul %8, %9, %cst_8 {dimension_numbers = #tpu.dot_dimension_numbers<[1], [0], [0], [1], [0, 0, 1, 1], [], []>} : vector<8x128xbf16>, vector<128x128xbf16>, vector<8x128xf32> -> vector<8x128xf32>
    %c0_9 = arith.constant 0 : index
    %c0_10 = arith.constant 0 : index
    %11 = vector.load %arg6[%c0_9, %c0_10] : memref<1x128xf32, #tpu.memory_space<vmem>>, vector<1x128xf32>
    %12 = vector.broadcast %11 : vector<1x128xf32> to vector<8x128xf32>
    %13 = arith.addf %10, %12 : vector<8x128xf32>
    %c0_11 = arith.constant 0 : index
    %c0_12 = arith.constant 0 : index
    %14 = vector.load %arg8[%c0_11, %c0_12] : memref<8x128xf32, #tpu.memory_space<vmem>>, vector<8x128xf32>
    tpu.vector_store %arg8[%c0_11, %c0_12], %13 {strides = array<i32>} : memref<8x128xf32, #tpu.memory_space<vmem>>, vector<8x128xf32>,
    %cst_13 = arith.constant dense<0xFF800000> : vector<8xf32>
    %15 = vector.multi_reduction <maximumf>, %13, %cst_13 [1] : vector<8x128xf32> to vector<8xf32>
    %16 = vector.shape_cast %15 : vector<8xf32> to vector<8x1xf32>
    %17 = vector.broadcast %16 : vector<8x1xf32> to vector<8x128xf32>
    %18 = arith.subf %13, %17 : vector<8x128xf32>
    %19 = math.exp %18 : vector<8x128xf32>
    %cst_14 = arith.constant dense<0.000000e+00> : vector<8xf32>
    %20 = vector.multi_reduction <add>, %19, %cst_14 [1] : vector<8x128xf32> to vector<8xf32>
    %21 = vector.shape_cast %20 : vector<8xf32> to vector<8x1xf32>
    %22 = math.log %21 : vector<8x1xf32>
    %23 = tpu.iota {dimensions = array<i32: 1>} : vector<8x128xi32>
    %c0_15 = arith.constant 0 : index
    %c0_16 = arith.constant 0 : index
    %24 = vector.load %arg7[%c0_15, %c0_16] : memref<8x1xi32, #tpu.memory_space<vmem>>, vector<8x1xi32>
    %25 = vector.broadcast %24 : vector<8x1xi32> to vector<8x128xi32>
    %26 = arith.cmpi eq, %23, %25 : vector<8x128xi32>
    %cst_17 = arith.constant 0.000000e+00 : f32
    %27 = vector.broadcast %cst_17 : f32 to vector<8x128xf32>
    %28 = arith.select %26, %18, %27 : vector<8x128xi1>, vector<8x128xf32>
    %cst_18 = arith.constant dense<0.000000e+00> : vector<8xf32>
    %29 = vector.multi_reduction <add>, %28, %cst_18 [1] : vector<8x128xf32> to vector<8xf32>
    %30 = vector.shape_cast %29 : vector<8xf32> to vector<8x1xf32>
    %31 = arith.subf %22, %30 : vector<8x1xf32>
    %c8_i32 = arith.constant 8 : i32
    %32 = arith.muli %arg0, %c8_i32 : i32
    %33 = tpu.iota {dimensions = array<i32: 0>} : vector<8x1xi32>
    %34 = vector.broadcast %32 : i32 to vector<8x1xi32>
    %35 = arith.addi %34, %33 : vector<8x1xi32>
    %c0_19 = arith.constant 0 : index
    %36 = memref.load %arg1[%c0_19] : memref<1xi32, #tpu.memory_space<smem>>
    %37 = vector.broadcast %36 : i32 to vector<8x1xi32>
    %38 = arith.cmpi slt, %35, %37 : vector<8x1xi32>
    %39 = arith.extui %38 : vector<8x1xi1> to vector<8x1xi32>
    %40 = arith.sitofp %39 : vector<8x1xi32> to vector<8x1xf32>
    %41 = arith.mulf %31, %40 : vector<8x1xf32>
    %42 = vector.shape_cast %41 : vector<8x1xf32> to vector<1x8x1xf32>
    %cst_20 = arith.constant dense<0.000000e+00> : vector<1xf32>
    %43 = vector.multi_reduction <add>, %42, %cst_20 [1, 2] : vector<1x8x1xf32> to vector<1xf32>
    %44 = vector.shape_cast %43 : vector<1xf32> to vector<1x1x1xf32>
    %45 = vector.extract %44[0, 0, 0] : f32 from vector<1x1x1xf32>
    %46 = vector.broadcast %45 : f32 to vector<1x128xf32>
    %c0_21 = arith.constant 0 : index
    %c0_22 = arith.constant 0 : index
    %47 = vector.load %arg9[%c0_21, %c0_22] : memref<1x128xf32, #tpu.memory_space<vmem>>, vector<1x128xf32>
    tpu.vector_store %arg9[%c0_21, %c0_22], %46 {strides = array<i32>} : memref<1x128xf32, #tpu.memory_space<vmem>>, vector<1x128xf32>,
    return
  }
  func.func @transform_0(%arg0: i32, %arg1: memref<1xi32, #tpu.memory_space<smem>>) -> (i32, i32) {
    %c0_i32 = arith.constant 0 : i32
    %c0_i32_0 = arith.constant 0 : i32
    return %arg0, %c0_i32 : i32, i32
  }
  func.func @transform_1(%arg0: i32, %arg1: memref<1xi32, #tpu.memory_space<smem>>) -> (i32, i32) {
    %c0_i32 = arith.constant 0 : i32
    %c0_i32_0 = arith.constant 0 : i32
    %c0_i32_1 = arith.constant 0 : i32
    return %c0_i32, %c0_i32_0 : i32, i32
  }
  func.func @transform_2(%arg0: i32, %arg1: memref<1xi32, #tpu.memory_space<smem>>) -> (i32, i32) {
    %c0_i32 = arith.constant 0 : i32
    %c0_i32_0 = arith.constant 0 : i32
    %c0_i32_1 = arith.constant 0 : i32
    return %c0_i32, %c0_i32_0 : i32, i32
  }
  func.func @transform_3(%arg0: i32, %arg1: memref<1xi32, #tpu.memory_space<smem>>) -> (i32, i32) {
    %c0_i32 = arith.constant 0 : i32
    %c0_i32_0 = arith.constant 0 : i32
    %c0_i32_1 = arith.constant 0 : i32
    return %c0_i32, %c0_i32_0 : i32, i32
  }
  func.func @transform_4(%arg0: i32, %arg1: memref<1xi32, #tpu.memory_space<smem>>) -> (i32, i32) {
    %c0_i32 = arith.constant 0 : i32
    %c0_i32_0 = arith.constant 0 : i32
    %c0_i32_1 = arith.constant 0 : i32
    return %c0_i32, %c0_i32_0 : i32, i32
  }
  func.func @transform_5(%arg0: i32, %arg1: memref<1xi32, #tpu.memory_space<smem>>) -> (i32, i32) {
    %c0_i32 = arith.constant 0 : i32
    %c0_i32_0 = arith.constant 0 : i32
    return %arg0, %c0_i32 : i32, i32
  }
  func.func @transform_6(%arg0: i32, %arg1: memref<1xi32, #tpu.memory_space<smem>>) -> (i32, i32) {
    %c0_i32 = arith.constant 0 : i32
    %c0_i32_0 = arith.constant 0 : i32
    return %arg0, %c0_i32 : i32, i32
  }
  func.func @transform_7(%arg0: i32, %arg1: memref<1xi32, #tpu.memory_space<smem>>) -> (i32, i32) {
    %c0_i32 = arith.constant 0 : i32
    %c0_i32_0 = arith.constant 0 : i32
    return %arg0, %c0_i32 : i32, i32
  }
}

</mosaic_0001>

<llo_original>
// kernel: mlp_forward.1
$region0: #{mlp_forward.1}
  #allocation0 [shape = 'u32[]', space=smem, size = 0x4, offset = 0x4, fixed_abs, tag = 'smem constant byte address 0x4 - core index']
  #allocation1 [shape = 'u32[144,128]{1,0:T(1,128)}', space=vmem, size = 0x12000, scoped, tag = 'internal scratch']
  #allocation2 [shape = 's32[1]{0}', space=sflag, size = 0x4, scoped, tag = 'scoped memory for mlp_forward.1']
  #allocation3 [shape = 's32[1]{0:T(128)S(6)}', space=smem, size = 0x200, scoped, tag = 'prefetched SMEM operand 0']
  %s0 = inlined_call_operand.<no memory space> [shape: s32[1], index: 0, kind: input, shape index: {}]
  %s1 = inlined_call_operand.vmem [shape: bf16[8,128], index: 1, kind: input, shape index: {}]
  %s2 = inlined_call_operand.vmem [shape: bf16[128,128], index: 2, kind: input, shape index: {}]
  %s3 = inlined_call_operand.vmem [shape: f32[1,128], index: 3, kind: input, shape index: {}]
  %s4 = inlined_call_operand.vmem [shape: bf16[128,128], index: 4, kind: input, shape index: {}]
  %s5 = inlined_call_operand.vmem [shape: f32[1,128], index: 5, kind: input, shape index: {}]
  %s6 = inlined_call_operand.vmem [shape: s32[8,1], index: 6, kind: input, shape index: {}]
  %s7 = inlined_call_operand.hbm [shape: f32[8,128], index: 7, kind: output, shape index: {0}]
  %s8 = inlined_call_operand.vmem [shape: f32[1,128], index: 8, kind: output, shape index: {1}]
  %9 = xla_tuple %s7, %s8
  %s10 = sld [smem:[#allocation0]]
  $region42: #{mlp_forward.1} parent=0
    _
  %s12 = ssub.s32 1, %s10
  %s13 = scalar_select 0, %s12, %s10
  %14 = sst [smem:[#allocation3]] %s0
  $region1: #{mlp_forward.1} parent=0
    #allocation4 [shape = 'u8[4096]{0}', space=vmem, size = 0x1000, scoped, tag = 'output window, operand 0, single buffered']
    #allocation5 [shape = 's32[1]{0}', space=sflag, size = 0x4, scoped, tag = 'scoped memory for mlp_forward.1']
    %15 = vsyncpa [#allocation5], 0
    // Predicated region
    $region2: #{mlp_forward.1} parent=1 // pred_check
      _
    $region3: #{mlp_forward.1} parent=1 // pred_check_branch
      %17 = sbr.rel (0) target = $region5
    $region4: #{mlp_forward.1} parent=1 // pred_region
      _
    $region5: #{mlp_forward.1} parent=1 // pred_fallthru
      _
    // Predicated region
    $region6: #{mlp_forward.1} parent=1 // pred_check
      _
    $region7: #{mlp_forward.1} parent=1 // pred_check_branch
      %19 = sbr.rel (0) target = $region9
    $region8: #{mlp_forward.1} parent=1 // pred_region
      _
    $region9: #{mlp_forward.1} parent=1 // pred_fallthru
      _
    // Predicated region
    $region10: #{mlp_forward.1} parent=1 // pred_check
      _
    $region11: #{mlp_forward.1} parent=1 // pred_check_branch
      %21 = sbr.rel (0) target = $region13
    $region12: #{mlp_forward.1} parent=1 // pred_region
      _
    $region13: #{mlp_forward.1} parent=1 // pred_fallthru
      _
    // Predicated region
    $region14: #{mlp_forward.1} parent=1 // pred_check
      _
    $region15: #{mlp_forward.1} parent=1 // pred_check_branch
      %23 = sbr.rel (0) target = $region17
    $region16: #{mlp_forward.1} parent=1 // pred_region
      _
    $region17: #{mlp_forward.1} parent=1 // pred_fallthru
      _
    // Predicated region
    $region18: #{mlp_forward.1} parent=1 // pred_check
      _
    $region19: #{mlp_forward.1} parent=1 // pred_check_branch
      %25 = sbr.rel (0) target = $region21
    $region20: #{mlp_forward.1} parent=1 // pred_region
      _
    $region21: #{mlp_forward.1} parent=1 // pred_fallthru
      _
    // Predicated region
    $region22: #{mlp_forward.1} parent=1 // pred_check
      _
    $region23: #{mlp_forward.1} parent=1 // pred_check_branch
      %27 = sbr.rel (0) target = $region25
    $region24: #{mlp_forward.1} parent=1 // pred_region
      _
    $region25: #{mlp_forward.1} parent=1 // pred_fallthru
      _
    %v29 = vld [vmem:[%s1] sm:$0xf]
    %v30 = vld [vmem:[%s2] sm:$0xf]
    %v31 = vld [vmem:[%s2 + $0x4] sm:$0xf]
    %v32 = vld [vmem:[%s2 + $0x8] sm:$0xf]
    %v33 = vld [vmem:[%s2 + $0xc] sm:$0xf]
    %v34 = vld [vmem:[%s2 + $0x10] sm:$0xf]
    %v35 = vld [vmem:[%s2 + $0x14] sm:$0xf]
    %v36 = vld [vmem:[%s2 + $0x18] sm:$0xf]
    %v37 = vld [vmem:[%s2 + $0x1c] sm:$0xf]
    %v38 = vld [vmem:[%s2 + $0x20] sm:$0xf]
    %v39 = vld [vmem:[%s2 + $0x24] sm:$0xf]
    %v40 = vld [vmem:[%s2 + $0x28] sm:$0xf]
    %v41 = vld [vmem:[%s2 + $0x2c] sm:$0xf]
    %v42 = vld [vmem:[%s2 + $0x30] sm:$0xf]
    %v43 = vld [vmem:[%s2 + $0x34] sm:$0xf]
    %v44 = vld [vmem:[%s2 + $0x38] sm:$0xf]
    %v45 = vld [vmem:[%s2 + $0x3c] sm:$0xf]
    %v46 = vld [vmem:[%s3] sm:$0x1]
    %v48 = vlaneseq
    %v49 = vshrl.u32 %v48, 7
    %v50 = vsub.s32 0, %v49
    %v51 = vrot.slane %v46, %v50
    %v69 = vunpack.c.l.b16 %v30
    %v70 = vunpack.c.l.b16 %v31
    %v71 = vunpack.c.l.b16 %v32
    %v72 = vunpack.c.l.b16 %v33
    %v73 = vunpack.c.l.b16 %v34
    %v74 = vunpack.c.l.b16 %v35
    %v75 = vunpack.c.l.b16 %v36
    %v76 = vunpack.c.l.b16 %v37
    %v77 = vunpack.c.l.b16 %v38
    %v78 = vunpack.c.l.b16 %v39
    %v79 = vunpack.c.l.b16 %v40
    %v80 = vunpack.c.l.b16 %v41
    %v81 = vunpack.c.l.b16 %v42
    %v82 = vunpack.c.l.b16 %v43
    %v83 = vunpack.c.l.b16 %v44
    %v84 = vunpack.c.l.b16 %v45
    %v85 = vpack.c.b16 %v70, %v69
    %v86 = vpack.c.b16 %v72, %v71
    %v87 = vpack.c.b16 %v74, %v73
    %v88 = vpack.c.b16 %v76, %v75
    %v89 = vpack.c.b16 %v78, %v77
    %v90 = vpack.c.b16 %v80, %v79
    %v91 = vpack.c.b16 %v82, %v81
    %v92 = vpack.c.b16 %v84, %v83
    %101 = vmatprep.subr.bf16.mxu0 0
    %102 = vmatpush1.bf16.msra.mxu0 %v85
    %103 = vmatprep.subr.bf16.mxu0 0
    %104 = vmatpush1.bf16.msra.mxu0 %v86
    %105 = vmatprep.subr.bf16.mxu0 0
    %106 = vmatpush1.bf16.msra.mxu0 %v87
    %107 = vmatprep.subr.bf16.mxu0 0
    %108 = vmatpush1.bf16.msra.mxu0 %v88
    %109 = vmatprep.subr.bf16.mxu0 0
    %110 = vmatpush1.bf16.msra.mxu0 %v89
    %111 = vmatprep.subr.bf16.mxu0 0
    %112 = vmatpush1.bf16.msra.mxu0 %v90
    %113 = vmatprep.subr.bf16.mxu0 0
    %114 = vmatpush1.bf16.msra.mxu0 %v91
    %115 = vmatprep.subr.bf16.mxu0 0
    %116 = vmatpush1.bf16.msra.mxu0 %v92
    %117 = vmatprep.subr.bf16.mxu0 0
    %118 = vmatpush1.bf16.msra.mxu0 0
    %119 = vmatprep.subr.bf16.mxu0 0
    %120 = vmatpush1.bf16.msra.mxu0 0
    %121 = vmatprep.subr.bf16.mxu0 0
    %122 = vmatpush1.bf16.msra.mxu0 0
    %123 = vmatprep.subr.bf16.mxu0 0
    %124 = vmatpush1.bf16.msra.mxu0 0
    %125 = vmatprep.subr.bf16.mxu0 0
    %126 = vmatpush1.bf16.msra.mxu0 0
    %127 = vmatprep.subr.bf16.mxu0 0
    %128 = vmatpush1.bf16.msra.mxu0 0
    %129 = vmatprep.subr.bf16.mxu0 0
    %130 = vmatpush1.bf16.msra.mxu0 0
    %131 = vmatprep.subr.bf16.mxu0 0
    %132 = vmatpush1.bf16.msra.mxu0 0
    %133 = vmatprep.mubr.bf16.mxu0 0
    %134 = vmatmul.mubr.bf16.gmra.mrb[0].mxu0 %v29
    %v135 = vpop.f32.mrb[0].mxu0
    %v136 = vadd.f32 %v51, %v135
    %v137 = vpop.f32.mrb[0].mxu0
    %v138 = vpop.f32.mrb[0].mxu0
    %v139 = vpop.f32.mrb[0].mxu0
    %140 = vdwg.mxu0
    %v141 = vmax.f32 %v136, 0.0
    %v142 = vpack.c.bf16 %v141, %v141
    %v143 = vld [vmem:[%s4] sm:$0xf]
    %v144 = vld [vmem:[%s4 + $0x4] sm:$0xf]
    %v145 = vld [vmem:[%s4 + $0x8] sm:$0xf]
    %v146 = vld [vmem:[%s4 + $0xc] sm:$0xf]
    %v147 = vld [vmem:[%s4 + $0x10] sm:$0xf]
    %v148 = vld [vmem:[%s4 + $0x14] sm:$0xf]
    %v149 = vld [vmem:[%s4 + $0x18] sm:$0xf]
    %v150 = vld [vmem:[%s4 + $0x1c] sm:$0xf]
    %v151 = vld [vmem:[%s4 + $0x20] sm:$0xf]
    %v152 = vld [vmem:[%s4 + $0x24] sm:$0xf]
    %v153 = vld [vmem:[%s4 + $0x28] sm:$0xf]
    %v154 = vld [vmem:[%s4 + $0x2c] sm:$0xf]
    %v155 = vld [vmem:[%s4 + $0x30] sm:$0xf]
    %v156 = vld [vmem:[%s4 + $0x34] sm:$0xf]
    %v157 = vld [vmem:[%s4 + $0x38] sm:$0xf]
    %v158 = vld [vmem:[%s4 + $0x3c] sm:$0xf]
    %v159 = vld [vmem:[%s5] sm:$0x1]
    %v161 = vlaneseq
    %v162 = vshrl.u32 %v161, 7
    %v163 = vsub.s32 0, %v162
    %v164 = vrot.slane %v159, %v163
    %v182 = vunpack.c.l.b16 %v143
    %v183 = vunpack.c.l.b16 %v144
    %v184 = vunpack.c.l.b16 %v145
    %v185 = vunpack.c.l.b16 %v146
    %v186 = vunpack.c.l.b16 %v147
    %v187 = vunpack.c.l.b16 %v148
    %v188 = vunpack.c.l.b16 %v149
    %v189 = vunpack.c.l.b16 %v150
    %v190 = vunpack.c.l.b16 %v151
    %v191 = vunpack.c.l.b16 %v152
    %v192 = vunpack.c.l.b16 %v153
    %v193 = vunpack.c.l.b16 %v154
    %v194 = vunpack.c.l.b16 %v155
    %v195 = vunpack.c.l.b16 %v156
    %v196 = vunpack.c.l.b16 %v157
    %v197 = vunpack.c.l.b16 %v158
    %v198 = vpack.c.b16 %v183, %v182
    %v199 = vpack.c.b16 %v185, %v184
    %v200 = vpack.c.b16 %v187, %v186
    %v201 = vpack.c.b16 %v189, %v188
    %v202 = vpack.c.b16 %v191, %v190
    %v203 = vpack.c.b16 %v193, %v192
    %v204 = vpack.c.b16 %v195, %v194
    %v205 = vpack.c.b16 %v197, %v196
    %214 = vmatprep.subr.bf16.mxu0 0
    %215 = vmatpush1.bf16.msra.mxu0 %v198
    %216 = vmatprep.subr.bf16.mxu0 0
    %217 = vmatpush1.bf16.msra.mxu0 %v199
    %218 = vmatprep.subr.bf16.mxu0 0
    %219 = vmatpush1.bf16.msra.mxu0 %v200
    %220 = vmatprep.subr.bf16.mxu0 0
    %221 = vmatpush1.bf16.msra.mxu0 %v201
    %222 = vmatprep.subr.bf16.mxu0 0
    %223 = vmatpush1.bf16.msra.mxu0 %v202
    %224 = vmatprep.subr.bf16.mxu0 0
    %225 = vmatpush1.bf16.msra.mxu0 %v203
    %226 = vmatprep.subr.bf16.mxu0 0
    %227 = vmatpush1.bf16.msra.mxu0 %v204
    %228 = vmatprep.subr.bf16.mxu0 0
    %229 = vmatpush1.bf16.msra.mxu0 %v205
    %230 = vmatprep.subr.bf16.mxu0 0
    %231 = vmatpush1.bf16.msra.mxu0 0
    %232 = vmatprep.subr.bf16.mxu0 0
    %233 = vmatpush1.bf16.msra.mxu0 0
    %234 = vmatprep.subr.bf16.mxu0 0
    %235 = vmatpush1.bf16.msra.mxu0 0
    %236 = vmatprep.subr.bf16.mxu0 0
    %237 = vmatpush1.bf16.msra.mxu0 0
    %238 = vmatprep.subr.bf16.mxu0 0
    %239 = vmatpush1.bf16.msra.mxu0 0
    %240 = vmatprep.subr.bf16.mxu0 0
    %241 = vmatpush1.bf16.msra.mxu0 0
    %242 = vmatprep.subr.bf16.mxu0 0
    %243 = vmatpush1.bf16.msra.mxu0 0
    %244 = vmatprep.subr.bf16.mxu0 0
    %245 = vmatpush1.bf16.msra.mxu0 0
    %246 = vmatprep.mubr.bf16.mxu0 0
    %247 = vmatmul.mubr.bf16.gmra.mrb[0].mxu0 %v142
    %v248 = vpop.f32.mrb[0].mxu0
    %v249 = vadd.f32 %v164, %v248
    %v250 = vpop.f32.mrb[0].mxu0
    %v251 = vpop.f32.mrb[0].mxu0
    %v252 = vpop.f32.mrb[0].mxu0
    %253 = vdwg.mxu0
    %254 = vst [vmem:[#allocation4] sm:$0xff] %v249
    %255 = vmax.xlane.f32.xlu0 %v249
    %v256 = vpop.xlane.xlu0 %255
    %v257 = vsub.f32 %v249, %v256
    %v258 = vmul.f32 %v257, 1.442695
    %v259 = vpow.pop %v258
    %260 = vadd.xlane.f32.xlu0 %v259
    %v261 = vpop.xlane.xlu0 %260
    %v262 = vlog2.pop %v261
    %v263 = vmul.f32 %v262, 0.6931472
    %v264 = vlaneseq
    %v265 = vand.u32 %v264, 127
    %v266 = vld [vmem:[%s6] sm:$0xff]
    %267 = vset.pattern.permute.xlu0 0
    %268 = vperm.xlu0 %267, %v266
    %v269 = vpop.permute.xlu0 %268
    %vm270 = vcmp.eq.s32.totalorder %v265, %v269
    %v271 = vsel %vm270, %v257, 0.0
    %272 = vadd.xlane.f32.xlu0 %v271
    %v273 = vpop.xlane.xlu0 %272
    %v274 = vsub.f32 %v263, %v273
    %s275 = smul.u32 0, 8
    %v276 = vlaneseq
    %v277 = vshrl.u32 %v276, 7
    %v278 = vstv %s275
    %v279 = vadd.s32 %v278, %v277
    %s280 = sld [smem:[#allocation3]]
    %v281 = vstv %s280
    %vm282 = vcmp.lt.s32.totalorder %v279, %v281
    %v283 = vsel %vm282, 1, 0
    %v284 = vcvt.s32.f32 %v283
    %v285 = vmul.f32 %v274, %v284
    %vm286 = vcmask 7168
    %v287 = vsel %vm286, %v285, 0.0
    %288 = vadd.xlane.f32.xlu0 %v287
    %v289 = vpop.xlane.xlu0 %288
    %v290 = vrot.slane %v289, 4
    %v291 = vadd.f32 %v289, %v290
    %v292 = vrot.slane %v291, 2
    %v293 = vadd.f32 %v291, %v292
    %v294 = vrot.slane %v293, 1
    %v295 = vadd.f32 %v293, %v294
    %s296 = vtos %v295
    %v297 = vstv %s296
    %298 = vst [vmem:[%s8] sm:$0x1] %v297
    // Predicated region
    $region26: #{mlp_forward.1} parent=1 // pred_check
      _
    $region27: #{mlp_forward.1} parent=1 // pred_check_branch
      %300 = sbr.rel (0) target = $region29
    $region28: #{mlp_forward.1} parent=1 // pred_region
      %s302 = ssub.s32 128, 128
      %303 = vsyncadd [#allocation5], %s302
      %s305 = sshll.u32 [#allocation4], 4
      %s306 = int_to_ptr.vmem [resolvable:$true] %s305
      %308 = dma.vmem_to_hbm [thread:$0]  %s306, 128, %s7, [#allocation5]
    $region29: #{mlp_forward.1} parent=1 // pred_fallthru
      _
    // Predicated region
    $region30: #{mlp_forward.1} parent=1 // pred_check
      _
    $region31: #{mlp_forward.1} parent=1 // pred_check_branch
      %310 = sbr.rel (0) target = $region33
    $region32: #{mlp_forward.1} parent=1 // pred_region
      _
    $region33: #{mlp_forward.1} parent=1 // pred_fallthru
      _
    // Predicated region
    $region34: #{mlp_forward.1} parent=1 // pred_check
      _
    $region35: #{mlp_forward.1} parent=1 // pred_check_branch
      %312 = sbr.rel (0) target = $region37
    $region36: #{mlp_forward.1} parent=1 // pred_region
      %313 = dma.done [#allocation5], 128
    $region37: #{mlp_forward.1} parent=1 // pred_fallthru
      _
    // Predicated region
    $region38: #{mlp_forward.1} parent=1 // pred_check
      _
    $region39: #{mlp_forward.1} parent=1 // pred_check_branch
      %315 = sbr.rel (0) target = $region41
    $region40: #{mlp_forward.1} parent=1 // pred_region
      _
    $region41: #{mlp_forward.1} parent=1 // pred_fallthru
      _
    %316 = vsyncpa [#allocation5], 1

</llo_original>
